<compile_context>
chip_gen: v7x
topology: tpu7x:2x2x1
jax: 0.10.0
libtpu: 0.0.40
codegen_flags: <defaults>
</compile_context>

<pallas_src>
import math

import jax
import jax.numpy as jnp
from jax import lax
from jax.experimental import pallas as pl
from jax.experimental.pallas import tpu as pltpu


def eca_kernel_size(in_channel: int, b: int = 1, gama: int = 2) -> int:
    k = int(abs((math.log(in_channel, 2) + b) / gama))
    return k if k % 2 else k + 1


def _cdiv(a: int, b: int) -> int:
    return -(-a // b)


def _vmem_capacity_bytes() -> int:
    try:
        return int(pltpu.get_tpu_info().vmem_capacity_bytes)
    except Exception:
        return 64 << 20          # conservative (v7x-sized) if query unavailable


_VMEM_CAP = _vmem_capacity_bytes()
_SMALL_VMEM = _VMEM_CAP <= (64 << 20)            # v7x-like: 64 MiB/TC, 2 TCs
_FUSED_SLAB_CAP = (8 << 20) if _SMALL_VMEM else (22 << 20)   # per-batch slab cap
_VMEM_LIMIT = (40 << 20) if _SMALL_VMEM else (96 << 20)      # scoped VMEM limit
_BLOCK_TARGET = 4 << 20                                       # soft fused block size
_REWEIGHT_TILE_TARGET = (4 << 20) if _SMALL_VMEM else (6 << 20)


def eca_att(x: jax.Array, conv_w: jax.Array) -> jax.Array:
    """x: [B, C, H, W]; conv_w: [k] taps of Conv1d(1, 1, k, bias=False, padding=k//2)."""
    B, C, H, W = x.shape
    k = int(conv_w.shape[0])
    pad = k // 2
    HW = H * W
    itemsize = x.dtype.itemsize

    x_flat = x.reshape(B, C, HW)            # metadata-only reshape
    conv_w = conv_w.astype(jnp.float32)
    inv_hw = 1.0 / float(HW)

    slab_bytes = C * HW * itemsize          # one batch element's block

    use_fused = slab_bytes <= _FUSED_SLAB_CAP
    if _SMALL_VMEM and B == 1:
        # A 1-step fused grid leaves the second TensorCore idle on v7x; the
        # HW-parallel two-pass grid keeps both cores streaming.
        use_fused = False

    if use_fused:
        # ---------------- fused single-pass path ----------------
        # Largest batch-block that stays under the soft block target while
        # still leaving at least min(B, 8) grid steps for pipelining /
        # megacore.  Default is Bt = 1 (longest grid).
        divisors = [d for d in range(1, B + 1) if B % d == 0]
        desired_steps = min(B, 8)
        Bt = 1
        for d in divisors:
            if d * slab_bytes <= _BLOCK_TARGET and B // d >= desired_steps:
                Bt = d
        grid = (B // Bt,)

        def fused_kernel(w_ref, x_ref, o_ref):
            # w_ref: SMEM (k,) f32 taps; x_ref/o_ref: (Bt, C, HW) VMEM blocks.
            xv = x_ref[...]
            # Global average pool, accumulated in f32 regardless of x dtype.
            pooled = jnp.sum(xv.astype(jnp.float32), axis=2) * inv_hw    # (Bt, C)
            # Channel-wise 1D conv as k shifted adds (roll + edge mask).
            conv = jnp.zeros_like(pooled)
            ch = lax.broadcasted_iota(jnp.int32, pooled.shape, 1)
            for t in range(k):
                s = t - pad
                if s == 0:
                    shifted = pooled
                else:
                    shifted = pltpu.roll(pooled, shift=(-s) % C, axis=1)
                    valid = (ch >= -s) & (ch < C - s)
                    shifted = jnp.where(valid, shifted, 0.0)
                conv = conv + w_ref[t] * shifted
            attn = jax.nn.sigmoid(conv)                                   # (Bt, C) f32
            # Reweight in the native dtype: no full-block f32 temporary.
            o_ref[...] = (xv * attn.astype(xv.dtype)[:, :, None]).astype(o_ref.dtype)

        out = pl.pallas_call(
            fused_kernel,
            out_shape=jax.ShapeDtypeStruct((B, C, HW), x.dtype),
            grid_spec=pltpu.PrefetchScalarGridSpec(
                num_scalar_prefetch=0,
                grid=grid,
                in_specs=[
                    pl.BlockSpec(memory_space=pltpu.MemorySpace.SMEM),    # conv taps
                    pl.BlockSpec((Bt, C, HW), lambda b: (b, 0, 0)),       # x
                ],
                out_specs=pl.BlockSpec((Bt, C, HW), lambda b: (b, 0, 0)),
            ),
            compiler_params=pltpu.CompilerParams(
                dimension_semantics=("parallel",),
                vmem_limit_bytes=_VMEM_LIMIT),
        )(conv_w, x_flat)
    else:
        # ---------------- two-pass path ----------------
        # Pass A: attention weights (tiny B*C result).  jnp.mean over the
        # un-padded x is a single HBM read pass; combined with Pass B this
        # path hits the two-pass minimum of 2 reads + 1 write of x.
        pooled = jnp.mean(x_flat, axis=2, dtype=jnp.float32)              # (B, C)
        conv = jnp.zeros_like(pooled)
        for t in range(k):
            s = t - pad
            if s >= 0:
                seg = jnp.pad(pooled[:, s:], ((0, 0), (0, s)))
            else:
                seg = jnp.pad(pooled[:, :C + s], ((0, 0), (-s, 0)))
            conv = conv + conv_w[t] * seg
        attn = jax.nn.sigmoid(conv)[:, :, None]                           # (B, C, 1)

        # Pass B: HW-tiled elementwise reweight (4-6 MiB tiles).  The ragged
        # last HW tile is handled by Pallas' masked output writeback.
        max_units = _cdiv(HW, 128)
        units = max(1, min(max_units,
                           _REWEIGHT_TILE_TARGET // (C * 128 * itemsize)))
        T = units * 128
        if T >= HW:
            T = HW                      # full-dim block is always legal
        grid = (B, _cdiv(HW, T))

        def reweight_kernel(a_ref, x_ref, o_ref):
            xv = x_ref[...]
            o_ref[...] = (xv * a_ref[...].astype(xv.dtype)).astype(o_ref.dtype)

        out = pl.pallas_call(
            reweight_kernel,
            out_shape=jax.ShapeDtypeStruct((B, C, HW), x.dtype),
            grid_spec=pltpu.PrefetchScalarGridSpec(
                num_scalar_prefetch=0,
                grid=grid,
                in_specs=[
                    # (1, C, 1) attn block lane-pads in VMEM (~C*128 words)
                    # but keeps a known-legal layout; the reweight path has
                    # ample VMEM headroom so the waste is immaterial.
                    pl.BlockSpec((1, C, 1), lambda b, h: (b, 0, 0)),       # attn
                    pl.BlockSpec((1, C, T), lambda b, h: (b, 0, h)),       # x
                ],
                out_specs=pl.BlockSpec((1, C, T), lambda b, h: (b, 0, h)),
            ),
            compiler_params=pltpu.CompilerParams(
                dimension_semantics=("parallel", "parallel"),
                vmem_limit_bytes=_VMEM_LIMIT),
        )(attn, x_flat)

    return out.reshape(B, C, H, W)


if __name__ == "__main__":
    B, C, H, W = 2, 8, 16, 16   # C=8 -> kernel_size=3, padding=1 (non-trivial conv)
    key = jax.random.PRNGKey(0)
    kx, kw = jax.random.split(key)

    x = jax.random.normal(kx, (B, C, H, W), dtype=jnp.float32)

    ksize = eca_kernel_size(C)                 # 3
    bound = 1.0 / math.sqrt(1 * ksize)         # PyTorch Conv1d default init range
    conv_w = jax.random.uniform(kw, (ksize,), minval=-bound, maxval=bound,
                                dtype=jnp.float32)

    out = eca_att(x, conv_w)
    jax.block_until_ready(out)

    # Plain-JAX reference (same semantics as the PyTorch forward).
    pooled = jnp.mean(x, axis=(2, 3))                                     # (B, C)
    pooled_pad = jnp.pad(pooled, ((0, 0), (ksize // 2, ksize // 2)))
    conv = jnp.stack(
        [jnp.sum(pooled_pad[:, o:o + ksize] * conv_w[None, :], axis=-1)
         for o in range(C)], axis=-1)                                     # (B, C)
    ref = jax.nn.sigmoid(conv)[:, :, None, None] * x
    assert jnp.allclose(out, ref, atol=1e-5, rtol=1e-5), "mismatch vs reference"

    print("KERNEL_OK")
</pallas_src>

<mosaic_0001>
module attributes {stable_mosaic.version = 11 : i64} {
  func.func @fused_kernel(%arg0: i32, %arg1: memref<3xf32, #tpu.memory_space<smem>>, %arg2: memref<1x8x256xf32, #tpu.memory_space<vmem>>, %arg3: memref<1x8x256xf32, #tpu.memory_space<vmem>>) attributes {dimension_semantics = [#tpu.dimension_semantics<parallel>], iteration_bounds = array<i64: 2>, scalar_prefetch = 0 : i64, scratch_operands = 0 : i64, tpu.core_type = #tpu.core_type<tc>, window_params = [{transform_indices = @transform_0, window_bounds = array<i64: 3>}, {transform_indices = @transform_1, window_bounds = array<i64: 1, 8, 256>}, {transform_indices = @transform_2, window_bounds = array<i64: 1, 8, 256>}]} {
    %c0 = arith.constant 0 : index
    %c0_0 = arith.constant 0 : index
    %c0_1 = arith.constant 0 : index
    %0 = vector.load %arg2[%c0, %c0_0, %c0_1] : memref<1x8x256xf32, #tpu.memory_space<vmem>>, vector<1x8x256xf32>
    %cst = arith.constant dense<0.000000e+00> : vector<1x8xf32>
    %1 = vector.multi_reduction <add>, %0, %cst [2] : vector<1x8x256xf32> to vector<1x8xf32>
    %cst_2 = arith.constant 3.906250e-03 : f32
    %2 = vector.broadcast %cst_2 : f32 to vector<1x8xf32>
    %3 = arith.mulf %1, %2 : vector<1x8xf32>
    %cst_3 = arith.constant 0.000000e+00 : f32
    %4 = vector.broadcast %cst_3 : f32 to vector<1x8xf32>
    %5 = tpu.iota {dimensions = array<i32: 1>} : vector<1x8xi32>
    %c1_i32 = arith.constant 1 : i32
    %6 = tpu.dynamic_rotate %3 by %c1_i32 dim 1 : vector<1x8xf32>, i32 -> vector<1x8xf32>
    %c1_i32_4 = arith.constant 1 : i32
    %7 = vector.broadcast %c1_i32_4 : i32 to vector<1x8xi32>
    %8 = arith.cmpi sge, %5, %7 : vector<1x8xi32>
    %c9_i32 = arith.constant 9 : i32
    %9 = vector.broadcast %c9_i32 : i32 to vector<1x8xi32>
    %10 = arith.cmpi slt, %5, %9 : vector<1x8xi32>
    %11 = arith.andi %8, %10 : vector<1x8xi1>
    %cst_5 = arith.constant 0.000000e+00 : f32
    %12 = vector.broadcast %cst_5 : f32 to vector<1x8xf32>
    %13 = arith.select %11, %6, %12 : vector<1x8xi1>, vector<1x8xf32>
    %c0_6 = arith.constant 0 : index
    %14 = memref.load %arg1[%c0_6] : memref<3xf32, #tpu.memory_space<smem>>
    %15 = vector.broadcast %14 : f32 to vector<1x8xf32>
    %16 = arith.mulf %15, %13 : vector<1x8xf32>
    %17 = arith.addf %4, %16 : vector<1x8xf32>
    %c1 = arith.constant 1 : index
    %18 = memref.load %arg1[%c1] : memref<3xf32, #tpu.memory_space<smem>>
    %19 = vector.broadcast %18 : f32 to vector<1x8xf32>
    %20 = arith.mulf %19, %3 : vector<1x8xf32>
    %21 = arith.addf %17, %20 : vector<1x8xf32>
    %c7_i32 = arith.constant 7 : i32
    %22 = tpu.dynamic_rotate %3 by %c7_i32 dim 1 : vector<1x8xf32>, i32 -> vector<1x8xf32>
    %c-1_i32 = arith.constant -1 : i32
    %23 = vector.broadcast %c-1_i32 : i32 to vector<1x8xi32>
    %24 = arith.cmpi sge, %5, %23 : vector<1x8xi32>
    %c7_i32_7 = arith.constant 7 : i32
    %25 = vector.broadcast %c7_i32_7 : i32 to vector<1x8xi32>
    %26 = arith.cmpi slt, %5, %25 : vector<1x8xi32>
    %27 = arith.andi %24, %26 : vector<1x8xi1>
    %cst_8 = arith.constant 0.000000e+00 : f32
    %28 = vector.broadcast %cst_8 : f32 to vector<1x8xf32>
    %29 = arith.select %27, %22, %28 : vector<1x8xi1>, vector<1x8xf32>
    %c2 = arith.constant 2 : index
    %30 = memref.load %arg1[%c2] : memref<3xf32, #tpu.memory_space<smem>>
    %31 = vector.broadcast %30 : f32 to vector<1x8xf32>
    %32 = arith.mulf %31, %29 : vector<1x8xf32>
    %33 = arith.addf %21, %32 : vector<1x8xf32>
    %34 = arith.negf %33 : vector<1x8xf32>
    %35 = math.exp %34 : vector<1x8xf32>
    %cst_9 = arith.constant 1.000000e+00 : f32
    %36 = vector.broadcast %cst_9 : f32 to vector<1x8xf32>
    %37 = arith.addf %36, %35 : vector<1x8xf32>
    %38 = arith.divf %36, %37 : vector<1x8xf32>
    %39 = vector.shape_cast %38 : vector<1x8xf32> to vector<1x8x1xf32>
    %40 = vector.broadcast %39 : vector<1x8x1xf32> to vector<1x8x256xf32>
    %41 = arith.mulf %0, %40 : vector<1x8x256xf32>
    %c0_10 = arith.constant 0 : index
    %c0_11 = arith.constant 0 : index
    %c0_12 = arith.constant 0 : index
    %42 = vector.load %arg3[%c0_10, %c0_11, %c0_12] : memref<1x8x256xf32, #tpu.memory_space<vmem>>, vector<1x8x256xf32>
    tpu.vector_store %arg3[%c0_10, %c0_11, %c0_12], %41 {strides = array<i32>} : memref<1x8x256xf32, #tpu.memory_space<vmem>>, vector<1x8x256xf32>,
    return
  }
  func.func @transform_0(%arg0: i32) -> i32 {
    %c0_i32 = arith.constant 0 : i32
    %c0_i32_0 = arith.constant 0 : i32
    return %c0_i32 : i32
  }
  func.func @transform_1(%arg0: i32) -> (i32, i32, i32) {
    %c0_i32 = arith.constant 0 : i32
    %c0_i32_0 = arith.constant 0 : i32
    %c0_i32_1 = arith.constant 0 : i32
    return %arg0, %c0_i32, %c0_i32_0 : i32, i32, i32
  }
  func.func @transform_2(%arg0: i32) -> (i32, i32, i32) {
    %c0_i32 = arith.constant 0 : i32
    %c0_i32_0 = arith.constant 0 : i32
    %c0_i32_1 = arith.constant 0 : i32
    return %arg0, %c0_i32, %c0_i32_0 : i32, i32, i32
  }
}

</mosaic_0001>

<llo_original>
// kernel: tpu_custom_call.1
$region0: #{tpu_custom_call.1}
  #allocation0 [shape = 'u32[]', space=smem, size = 0x4, offset = 0x4, fixed_abs, tag = 'smem constant byte address 0x4 - core index']
  #allocation1 [shape = 'u32[144,128]{1,0:T(1,128)}', space=vmem, size = 0x12000, scoped, tag = 'internal scratch']
  %s0 = inlined_call_operand.hbm [shape: f32[3], index: 0, kind: input, shape index: {}]
  %s1 = inlined_call_operand.hbm [shape: f32[2,8,256], index: 1, kind: input, shape index: {}]
  %s2 = inlined_call_operand.hbm [shape: f32[2,8,256], index: 2, kind: output, shape index: {}]
  %s3 = sld [smem:[#allocation0]]
  $region49: #{tpu_custom_call.1} parent=0
    _
  %s5 = ssub.s32 1, %s3
  %s6 = scalar_select 0, %s5, %s3
  $region1: #{tpu_custom_call.1} parent=0
    #allocation2 [shape = 'u8[512]{0}', space=smem, size = 0x200, scoped, tag = 'input window, operand 0, single buffered']
    #allocation3 [shape = 's32[2]{0}', space=sflag, size = 0x8, scoped, tag = 'scoped memory for tpu_custom_call.1']
    #allocation4 [shape = 's32[2]{0}', space=sflag, size = 0x8, scoped, tag = 'scoped memory for tpu_custom_call.1']
    #allocation5 [shape = 's32[2]{0}', space=sflag, size = 0x8, scoped, tag = 'scoped memory for tpu_custom_call.1']
    #allocation6 [shape = 'u8[16384]{0}', space=vmem, size = 0x4000, scoped, tag = 'input window, operand 1']
    #allocation7 [shape = 'u8[16384]{0}', space=vmem, size = 0x4000, scoped, tag = 'output window, operand 0']
    %7 = vsyncpa [#allocation5], 0
    %8 = vsyncpa [#allocation3], 0
    %s9 = scalar_lea.sflag [#allocation3], 1
    %10 = vsyncpa %s9, 0
    %11 = vsyncpa [#allocation4], 0
    %s12 = scalar_lea.sflag [#allocation4], 1
    %13 = vsyncpa %s12, 0
    loop: start=0, step=1, limit=4
    $region2: #{tpu_custom_call.1} parent=1 // loop_pre_header
      _
    $region3: #{tpu_custom_call.1} parent=1 // loop_header
      %s15 = sphi 0, %s19
      %p16 = scmp.ge.s32.totalorder %s15, 4
      %s23 = sphi 0, %s23
      %s25 = sphi 0, %s23
      %s26 = sphi 0, %s25
      %s40 = sphi 0, %s26
      %s46 = sphi 0, %s48
      %s49 = sphi 0, %s46
      %s50 = sphi 0, %s49
      %s66 = sphi 0, %s50
      %s72 = sphi 0, %s74
      %s75 = sphi 0, %s72
      %s76 = sphi 0, %s75
      %s92 = sphi 0, %s76
    $region4: #{tpu_custom_call.1} parent=1 // loop_header_branch
      %18 = sbr.rel (%p16) target = $region8
    $region5: #{tpu_custom_call.1} parent=1 // loop_body
      %s20 = ssub.s32 %s15, 1
      %s21 = ssub.s32 %s15, 2
      %s22 = sadd.s32 %s15, 1
      %s24 = sadd.s32 %s23, 1
      %p27 = scmp.eq.s32.totalorder %s15, 1
      %p28 = scmp.ne.s32.totalorder %s23, %s25
      %p29 = scmp.eq.s32.totalorder %s15, 0
      %p30 = por %p28, %p29
      %p31 = scmp.ne.s32.totalorder %s23, %s25
      %p32 = scmp.eq.s32.totalorder %s20, 1
      %p33 = por %p31, %p32
      %p34 = scmp.ne.s32.totalorder %s25, %s26
      %p35 = scmp.eq.s32.totalorder %s20, 0
      %p36 = por %p34, %p35
      %p37 = scmp.ne.s32.totalorder %s25, %s26
      %p38 = scmp.eq.s32.totalorder %s21, 1
      %p39 = por %p37, %p38
      %p41 = scmp.ne.s32.totalorder %s26, %s40
      %p42 = scmp.eq.s32.totalorder %s21, 0
      %p43 = por %p41, %p42
      %s44 = ssub.s32 %s15, %s22
      %p45 = scmp.eq.s32.totalorder %s44, 0
      %s47 = sadd.s32 %s46, 1
      %s48 = scalar_select %p45, %s46, %s47
      %p51 = pneg %p45
      %p52 = scmp.eq.s32.totalorder %s15, 1
      %p53 = por %p51, %p52
      %p54 = scmp.ne.s32.totalorder %s46, %s49
      %p55 = scmp.eq.s32.totalorder %s15, 0
      %p56 = por %p54, %p55
      %p57 = scmp.ne.s32.totalorder %s46, %s49
      %p58 = scmp.eq.s32.totalorder %s20, 1
      %p59 = por %p57, %p58
      %p60 = scmp.ne.s32.totalorder %s49, %s50
      %p61 = scmp.eq.s32.totalorder %s20, 0
      %p62 = por %p60, %p61
      %p63 = scmp.ne.s32.totalorder %s49, %s50
      %p64 = scmp.eq.s32.totalorder %s21, 1
      %p65 = por %p63, %p64
      %p67 = scmp.ne.s32.totalorder %s50, %s66
      %p68 = scmp.eq.s32.totalorder %s21, 0
      %p69 = por %p67, %p68
      %s70 = ssub.s32 %s15, %s22
      %p71 = scmp.eq.s32.totalorder %s70, 0
      %s73 = sadd.s32 %s72, 1
      %s74 = scalar_select %p71, %s72, %s73
      %p77 = pneg %p71
      %p78 = scmp.eq.s32.totalorder %s15, 1
      %p79 = por %p77, %p78
      %p80 = scmp.ne.s32.totalorder %s72, %s75
      %p81 = scmp.eq.s32.totalorder %s15, 0
      %p82 = por %p80, %p81
      %p83 = scmp.ne.s32.totalorder %s72, %s75
      %p84 = scmp.eq.s32.totalorder %s20, 1
      %p85 = por %p83, %p84
      %p86 = scmp.ne.s32.totalorder %s75, %s76
      %p87 = scmp.eq.s32.totalorder %s20, 0
      %p88 = por %p86, %p87
      %p89 = scmp.ne.s32.totalorder %s75, %s76
      %p90 = scmp.eq.s32.totalorder %s21, 1
      %p91 = por %p89, %p90
      %p93 = scmp.ne.s32.totalorder %s76, %s92
      %p94 = scmp.eq.s32.totalorder %s21, 0
      %p95 = por %p93, %p94
      %p96 = scmp.le.s32.totalorder 1, %s15
      %p97 = scmp.lt.s32.totalorder %s15, 3
      %p98 = pnand %p96, %p97
      %p99 = pneg %p98
      // Predicated region
      $region9: #{tpu_custom_call.1} parent=5 // pred_check
        _
      $region10: #{tpu_custom_call.1} parent=5 // pred_check_branch
        %101 = sbr.rel (%p98) target = $region12
      $region11: #{tpu_custom_call.1} parent=5 // pred_region
        %s102 = ssub.s32 %s15, 1
        // Predicated region
        $region13: #{tpu_custom_call.1} parent=11 // pred_check
          %p103 = pneg %p36
        $region14: #{tpu_custom_call.1} parent=11 // pred_check_branch
          %105 = sbr.rel (%p103) target = $region16
        $region15: #{tpu_custom_call.1} parent=11 // pred_region
          %s107 = ssub.s32 16, 16
          %108 = vsyncadd [#allocation5], %s107
          %111 = dma.hbm_to_smem %s0, 16, [#allocation2], [#allocation5]
        $region16: #{tpu_custom_call.1} parent=11 // pred_fallthru
          _
      $region12: #{tpu_custom_call.1} parent=5 // pred_fallthru
        _
      %p112 = scmp.lt.s32.totalorder %s15, 2
      // Predicated region
      $region17: #{tpu_custom_call.1} parent=5 // pred_check
        %p113 = pneg %p112
      $region18: #{tpu_custom_call.1} parent=5 // pred_check_branch
        %115 = sbr.rel (%p113) target = $region20
      $region19: #{tpu_custom_call.1} parent=5 // pred_region
        // Predicated region
        $region21: #{tpu_custom_call.1} parent=19 // pred_check
          %p116 = pneg %p56
        $region22: #{tpu_custom_call.1} parent=19 // pred_check_branch
          %118 = sbr.rel (%p116) target = $region24
        $region23: #{tpu_custom_call.1} parent=19 // pred_region
          %s119 = sand.u32 %s46, 1
          %s120 = scalar_lea.sflag [#allocation3], %s119
          %s121 = sand.u32 %s46, 1
          %s122 = smul.addr %s121, 16
          %s123 = scalar_lea.vmem [#allocation6], %s122
          %s125 = ssub.s32 256, 256
          %126 = vsyncadd %s120, %s125
          %s127 = smul.addr %s15, 2
          %s128 = smul.addr %s127, 128
          %s129 = scalar_lea.hbm %s1, %s128
          %s131 = sshll.u32 %s123, 4
          %s132 = int_to_ptr.vmem [resolvable:$true] %s131
          %134 = dma.hbm_to_vmem [thread:$0]  %s129, 256, %s132, %s120
        $region24: #{tpu_custom_call.1} parent=19 // pred_fallthru
          _
      $region20: #{tpu_custom_call.1} parent=5 // pred_fallthru
        _
      %p135 = scmp.le.s32.totalorder 1, %s15
      %p136 = scmp.lt.s32.totalorder %s15, 3
      %p137 = pnand %p135, %p136
      %p138 = pneg %p137
      // Predicated region
      $region25: #{tpu_custom_call.1} parent=5 // pred_check
        _
      $region26: #{tpu_custom_call.1} parent=5 // pred_check_branch
        %140 = sbr.rel (%p137) target = $region28
      $region27: #{tpu_custom_call.1} parent=5 // pred_region
        %s141 = ssub.s32 %s15, 1
        // Predicated region
        $region29: #{tpu_custom_call.1} parent=27 // pred_check
          %p142 = pneg %p36
        $region30: #{tpu_custom_call.1} parent=27 // pred_check_branch
          %144 = sbr.rel (%p142) target = $region32
        $region31: #{tpu_custom_call.1} parent=27 // pred_region
          %145 = dma.done [#allocation5], 16
        $region32: #{tpu_custom_call.1} parent=27 // pred_fallthru
          _
        %s146 = sand.u32 %s49, 1
        %s147 = scalar_lea.sflag [#allocation3], %s146
        %s148 = sand.u32 %s49, 1
        %s149 = smul.addr %s148, 16
        %s150 = scalar_lea.vmem [#allocation6], %s149
        // Predicated region
        $region33: #{tpu_custom_call.1} parent=27 // pred_check
          %p151 = pneg %p62
        $region34: #{tpu_custom_call.1} parent=27 // pred_check_branch
          %153 = sbr.rel (%p151) target = $region36
        $region35: #{tpu_custom_call.1} parent=27 // pred_region
          %154 = dma.done %s147, 256
        $region36: #{tpu_custom_call.1} parent=27 // pred_fallthru
          _
        %155 = sfence
        %p156 = pneg %p36
        %p157 = pneg %p33
        %s158 = sand.u32 %s49, 1
        %s159 = scalar_lea.sflag [#allocation3], %s158
        %s160 = sand.u32 %s49, 1
        %s161 = smul.addr %s160, 16
        %s162 = scalar_lea.vmem [#allocation6], %s161
        %p163 = pneg %p62
        %p164 = pneg %p59
        %p165 = pneg %p88
        %p166 = pneg %p85
        %s167 = sand.u32 %s75, 1
        %s168 = scalar_lea.sflag [#allocation4], %s167
        %s169 = sand.u32 %s75, 1
        %s170 = smul.addr %s169, 16
        %s171 = scalar_lea.vmem [#allocation7], %s170
        %v172 = vld [vmem:[%s150] sm:$0xff]
        %v173 = vld [vmem:[%s150 + $0x8] sm:$0xff]
        %v174 = vadd.f32 %v172, %v173
        %175 = vadd.xlane.f32.xlu0 %v174
        %v176 = vpop.xlane.xlu0 %175
        %v177 = vmul.f32 %v176, 0.00390625
        %v178 = vlaneseq
        %v179 = vand.u32 %v178, 127
        %v181 = vlaneseq
        %v182 = vshrl.u32 %v181, 7
        %v183 = vsub.s32 %v179, %v182
        %v184 = vrot.slane %v177, %v183
        %vm186 = vcmask 1047616
        %187 = vrot.lane.b32.xlu0 %v184, 8
        %v188 = vpop.permute.xlu0 %187
        %v189 = vsel %vm186, %v188, %v184
        %190 = vrot.lane.b32.xlu0 %v189, 8
        %v191 = vpop.permute.xlu0 %190
        %v192 = vsel %vm186, %v191, %v184
        %vm193 = vcmp.ge.s32.totalorder %v179, 1
        %vm194 = vcmp.lt.s32.totalorder %v179, 9
        %vm195 = vmand %vm193, %vm194
        %197 = vrot.lane.b32.xlu0 %v192, 121
        %v198 = vpop.permute.xlu0 %197
        %v200 = vsel %vm195, %v198, 0.0
        %s201 = sld [smem:[#allocation2]]
        %v202 = vstv %s201
        %v203 = vmul.f32 %v202, %v200
        %v204 = vadd.f32 %v203, 0.0
        %s205 = sld [smem:[#allocation2 + $0x1]]
        %v206 = vstv %s205
        %v207 = vmul.f32 %v206, %v177
        %v209 = vlaneseq
        %v210 = vshrl.u32 %v209, 7
        %v211 = vsub.s32 %v179, %v210
        %v212 = vrot.slane %v207, %v211
        %v214 = vadd.f32 %v204, %v212
        %vm215 = vcmp.ge.s32.totalorder %v179, 4294967295
        %vm216 = vcmp.lt.s32.totalorder %v179, 7
        %vm217 = vmand %vm215, %vm216
        %218 = vrot.lane.b32.xlu0 %v192, 127
        %v219 = vpop.permute.xlu0 %218
        %v221 = vsel %vm217, %v219, 0.0
        %s222 = sld [smem:[#allocation2 + $0x2]]
        %v223 = vstv %s222
        %v224 = vmul.f32 %v223, %v221
        %v225 = vadd.f32 %v214, %v224
        %v226 = vxor.u32 %v225, 2147483648
        %v227 = vmul.f32 %v226, 1.442695
        %v228 = vpow.pop %v227
        %v229 = vadd.f32 %v228, 1.0
        %v230 = vrcp.pop %v229
        %v231 = vmul.f32 1.0, %v230
        %v232 = vlaneseq
        %v233 = vshrl.u32 %v232, 7
        %v234 = vsub.s32 0, %v233
        %v235 = vrot.slane %v231, %v234
        %237 = vbcast.lane.b32.xlu0 %v235, 256
        %v238 = vpop.permute.xlu0 %237
        %v239 = vmul.f32 %v172, %v238
        %v240 = vmul.f32 %v173, %v238
        %241 = vst [vmem:[%s171] sm:$0xff] %v239
        %242 = vst [vmem:[%s171 + $0x8] sm:$0xff] %v240
        %s243 = sand.u32 %s75, 1
        %s244 = scalar_lea.sflag [#allocation4], %s243
        %s245 = sand.u32 %s75, 1
        %s246 = smul.addr %s245, 16
        %s247 = scalar_lea.vmem [#allocation7], %s246
        // Predicated region
        $region37: #{tpu_custom_call.1} parent=27 // pred_check
          %p248 = pneg %p85
        $region38: #{tpu_custom_call.1} parent=27 // pred_check_branch
          %250 = sbr.rel (%p248) target = $region40
        $region39: #{tpu_custom_call.1} parent=27 // pred_region
          %s252 = ssub.s32 256, 256
          %253 = vsyncadd %s244, %s252
          %s254 = smul.addr %s20, 2
          %s255 = smul.addr %s254, 128
          %s256 = scalar_lea.hbm %s2, %s255
          %s258 = sshll.u32 %s247, 4
          %s259 = int_to_ptr.vmem [resolvable:$true] %s258
          %261 = dma.vmem_to_hbm [thread:$0]  %s259, 256, %s256, %s244
        $region40: #{tpu_custom_call.1} parent=27 // pred_fallthru
          _
      $region28: #{tpu_custom_call.1} parent=5 // pred_fallthru
        _
      %p262 = scmp.le.s32.totalorder 2, %s15
      // Predicated region
      $region41: #{tpu_custom_call.1} parent=5 // pred_check
        %p263 = pneg %p262
      $region42: #{tpu_custom_call.1} parent=5 // pred_check_branch
        %265 = sbr.rel (%p263) target = $region44
      $region43: #{tpu_custom_call.1} parent=5 // pred_region
        %s266 = ssub.s32 %s15, 2
        // Predicated region
        $region45: #{tpu_custom_call.1} parent=43 // pred_check
          %p267 = pneg %p91
        $region46: #{tpu_custom_call.1} parent=43 // pred_check_branch
          %269 = sbr.rel (%p267) target = $region48
        $region47: #{tpu_custom_call.1} parent=43 // pred_region
          %s270 = sand.u32 %s76, 1
          %s271 = scalar_lea.sflag [#allocation4], %s270
          %s272 = sand.u32 %s76, 1
          %s273 = smul.addr %s272, 16
          %s274 = scalar_lea.vmem [#allocation7], %s273
          %275 = dma.done %s271, 256
        $region48: #{tpu_custom_call.1} parent=43 // pred_fallthru
          _
      $region44: #{tpu_custom_call.1} parent=5 // pred_fallthru
        _
    $region6: #{tpu_custom_call.1} parent=1 // loop_footer
      %s19 = sadd.s32 1, %s15
    $region7: #{tpu_custom_call.1} parent=1 // loop_footer_branch
      %14 = sbr.rel target = $region3
    $region8: #{tpu_custom_call.1} parent=1 // loop_exit
      _
    %276 = vsyncpa [#allocation3], 1
    %s277 = scalar_lea.sflag [#allocation3], 1
    %278 = vsyncpa %s277, 1
    %279 = vsyncpa [#allocation4], 1
    %s280 = scalar_lea.sflag [#allocation4], 1
    %281 = vsyncpa %s280, 1
    %282 = vsyncpa [#allocation5], 1
    %s283 = scalar_lea.sflag [#allocation5], 1
    %284 = vsyncpa %s283, 1

</llo_original>
